<compile_context>
chip_gen: v7x
topology: tpu7x:2x2x1
jax: 0.10.0
libtpu: 0.0.40
codegen_flags: <defaults>
</compile_context>

<pallas_src>
import jax
import jax.numpy as jnp
from jax.experimental import pallas as pl
from jax.experimental.pallas import tpu as pltpu

_LANE = 128


def _hardtanh_kernel(x_ref, o_ref):
    o_ref[...] = jnp.clip(x_ref[...], -1.0, 1.0)


def hardtanh(x: jax.Array, *, row_tile: int = 1024) -> jax.Array:
    """Elementwise Hardtanh (clamp to [-1, 1]) via a Pallas TPU kernel."""
    orig_shape = x.shape
    dtype = x.dtype

    flat = x.reshape(-1)
    n = flat.shape[0]

    # Pad only to a multiple of 128 lanes (usually zero padding).
    n_pad = (-n) % _LANE
    if n_pad:
        flat = jnp.pad(flat, (0, n_pad))
    rows = flat.shape[0] // _LANE
    x2d = flat.reshape(rows, _LANE)

    if rows <= row_tile:
        # Whole tensor in one block: no grid, no per-step pipeline overhead.
        out2d = pl.pallas_call(
            _hardtanh_kernel,
            out_shape=jax.ShapeDtypeStruct((rows, _LANE), dtype),
            in_specs=[pl.BlockSpec((rows, _LANE), lambda: (0, 0))],
            out_specs=pl.BlockSpec((rows, _LANE), lambda: (0, 0)),
        )(x2d)
    else:
        # Large inputs: tiled, auto-pipelined, partial last block handled by
        # Pallas (clamp of padded garbage is discarded on store).
        grid = (pl.cdiv(rows, row_tile),)
        out2d = pl.pallas_call(
            _hardtanh_kernel,
            out_shape=jax.ShapeDtypeStruct((rows, _LANE), dtype),
            grid=grid,
            in_specs=[pl.BlockSpec((row_tile, _LANE), lambda i: (i, 0))],
            out_specs=pl.BlockSpec((row_tile, _LANE), lambda i: (i, 0)),
            compiler_params=pltpu.CompilerParams(
                dimension_semantics=("parallel",)
            ),
        )(x2d)

    out_flat = out2d.reshape(-1)
    if n_pad:
        out_flat = out_flat[:n]
    return out_flat.reshape(orig_shape)


if __name__ == "__main__":
    key = jax.random.PRNGKey(0)
    # Matches the module's test data shape: torch.rand(1, 64, 64, 3).
    # Use a wider range than rand() so the clamp actually activates.
    x = jax.random.uniform(key, (1, 64, 64, 3), dtype=jnp.float32,
                           minval=-3.0, maxval=3.0)

    y = hardtanh(x)
    y = jax.block_until_ready(y)

    # Reference check against plain JAX clamp.
    y_ref = jnp.clip(x, -1.0, 1.0)
    assert y.shape == x.shape and y.dtype == x.dtype
    assert jnp.allclose(y, y_ref), "mismatch vs reference clamp"

    # Also exercise the tiled (gridded) path with a larger, non-tile-aligned
    # size to make sure the partial-last-block path is correct.
    key2 = jax.random.PRNGKey(1)
    x_big = jax.random.uniform(key2, (3, 300, 301), dtype=jnp.float32,
                               minval=-3.0, maxval=3.0)
    y_big = jax.block_until_ready(hardtanh(x_big, row_tile=128))
    assert jnp.allclose(y_big, jnp.clip(x_big, -1.0, 1.0))

    print("KERNEL_OK")
</pallas_src>

<mosaic_0001>
module attributes {stable_mosaic.version = 11 : i64} {
  func.func @_hardtanh_kernel(%arg0: memref<96x128xf32, #tpu.memory_space<vmem>>, %arg1: memref<96x128xf32, #tpu.memory_space<vmem>>) attributes {dimension_semantics = [], scalar_prefetch = 0 : i64, scratch_operands = 0 : i64, tpu.core_type = #tpu.core_type<tc>} {
    %c0 = arith.constant 0 : index
    %c0_0 = arith.constant 0 : index
    %0 = vector.load %arg0[%c0, %c0_0] : memref<96x128xf32, #tpu.memory_space<vmem>>, vector<96x128xf32>
    %cst = arith.constant -1.000000e+00 : f32
    %cst_1 = arith.constant 1.000000e+00 : f32
    %1 = vector.broadcast %cst : f32 to vector<96x128xf32>
    %2 = arith.maximumf %1, %0 : vector<96x128xf32>
    %3 = vector.broadcast %cst_1 : f32 to vector<96x128xf32>
    %4 = arith.minimumf %3, %2 : vector<96x128xf32>
    %c0_2 = arith.constant 0 : index
    %c0_3 = arith.constant 0 : index
    %5 = vector.load %arg1[%c0_2, %c0_3] : memref<96x128xf32, #tpu.memory_space<vmem>>, vector<96x128xf32>
    tpu.vector_store %arg1[%c0_2, %c0_3], %4 {strides = array<i32>} : memref<96x128xf32, #tpu.memory_space<vmem>>, vector<96x128xf32>,
    return
  }
}

</mosaic_0001>

<llo_original>
// kernel: tpu_custom_call.1
$region0: #{tpu_custom_call.1}
  #allocation0 [shape = 'u32[]', space=smem, size = 0x4, offset = 0x4, fixed_abs, tag = 'smem constant byte address 0x4 - core index']
  #allocation1 [shape = 'u32[144,128]{1,0:T(1,128)}', space=vmem, size = 0x12000, scoped, tag = 'internal scratch']
  %s0 = inlined_call_operand.hbm [shape: f32[96,128], index: 0, kind: input, shape index: {}]
  %s1 = inlined_call_operand.hbm [shape: f32[96,128], index: 1, kind: output, shape index: {}]
  %s2 = sld [smem:[#allocation0]]
  $region18: #{tpu_custom_call.1} parent=0
    _
  %s4 = ssub.s32 1, %s2
  %s5 = scalar_select 0, %s4, %s2
  $region1: #{tpu_custom_call.1} parent=0
    #allocation2 [shape = 'u8[49152]{0}', space=vmem, size = 0xc000, scoped, tag = 'input window, operand 0, single buffered']
    #allocation3 [shape = 's32[1]{0}', space=sflag, size = 0x4, scoped, tag = 'scoped memory for tpu_custom_call.1']
    #allocation4 [shape = 's32[1]{0}', space=sflag, size = 0x4, scoped, tag = 'scoped memory for tpu_custom_call.1']
    #allocation5 [shape = 'u8[49152]{0}', space=vmem, size = 0xc000, scoped, tag = 'output window, operand 0, single buffered']
    %6 = vsyncpa [#allocation3], 0
    %7 = vsyncpa [#allocation4], 0
    // Predicated region
    $region2: #{tpu_custom_call.1} parent=1 // pred_check
      _
    $region3: #{tpu_custom_call.1} parent=1 // pred_check_branch
      %9 = sbr.rel (0) target = $region5
    $region4: #{tpu_custom_call.1} parent=1 // pred_region
      %s11 = ssub.s32 1536, 1536
      %12 = vsyncadd [#allocation3], %s11
      %s13 = sshll.u32 [#allocation2], 4
      %s14 = int_to_ptr.vmem [resolvable:$true] %s13
      %19 = dma.hbm_to_vmem [thread:$0]  %s0, 1536, %s14, [#allocation3], 128, 128, 8
    $region5: #{tpu_custom_call.1} parent=1 // pred_fallthru
      _
    // Predicated region
    $region6: #{tpu_custom_call.1} parent=1 // pred_check
      _
    $region7: #{tpu_custom_call.1} parent=1 // pred_check_branch
      %21 = sbr.rel (0) target = $region9
    $region8: #{tpu_custom_call.1} parent=1 // pred_region
      %22 = dma.done [#allocation3], 1536
    $region9: #{tpu_custom_call.1} parent=1 // pred_fallthru
      _
    %v23 = vld [vmem:[#allocation2] sm:$0xff]
    %v24 = vld [vmem:[#allocation2 + $0x8] sm:$0xff]
    %v25 = vld [vmem:[#allocation2 + $0x10] sm:$0xff]
    %v26 = vld [vmem:[#allocation2 + $0x18] sm:$0xff]
    %v27 = vld [vmem:[#allocation2 + $0x20] sm:$0xff]
    %v28 = vld [vmem:[#allocation2 + $0x28] sm:$0xff]
    %v29 = vld [vmem:[#allocation2 + $0x30] sm:$0xff]
    %v30 = vld [vmem:[#allocation2 + $0x38] sm:$0xff]
    %v31 = vld [vmem:[#allocation2 + $0x40] sm:$0xff]
    %v32 = vld [vmem:[#allocation2 + $0x48] sm:$0xff]
    %v33 = vld [vmem:[#allocation2 + $0x50] sm:$0xff]
    %v34 = vld [vmem:[#allocation2 + $0x58] sm:$0xff]
    %v35 = vmax.f32 %v23, -1.0
    %v36 = vmax.f32 %v24, -1.0
    %v37 = vmax.f32 %v25, -1.0
    %v38 = vmax.f32 %v26, -1.0
    %v39 = vmax.f32 %v27, -1.0
    %v40 = vmax.f32 %v28, -1.0
    %v41 = vmax.f32 %v29, -1.0
    %v42 = vmax.f32 %v30, -1.0
    %v43 = vmax.f32 %v31, -1.0
    %v44 = vmax.f32 %v32, -1.0
    %v45 = vmax.f32 %v33, -1.0
    %v46 = vmax.f32 %v34, -1.0
    %v47 = vmin.f32 %v35, 1.0
    %v48 = vmin.f32 %v36, 1.0
    %v49 = vmin.f32 %v37, 1.0
    %v50 = vmin.f32 %v38, 1.0
    %v51 = vmin.f32 %v39, 1.0
    %v52 = vmin.f32 %v40, 1.0
    %v53 = vmin.f32 %v41, 1.0
    %v54 = vmin.f32 %v42, 1.0
    %v55 = vmin.f32 %v43, 1.0
    %v56 = vmin.f32 %v44, 1.0
    %v57 = vmin.f32 %v45, 1.0
    %v58 = vmin.f32 %v46, 1.0
    %59 = vst [vmem:[#allocation5] sm:$0xff] %v47
    %60 = vst [vmem:[#allocation5 + $0x8] sm:$0xff] %v48
    %61 = vst [vmem:[#allocation5 + $0x10] sm:$0xff] %v49
    %62 = vst [vmem:[#allocation5 + $0x18] sm:$0xff] %v50
    %63 = vst [vmem:[#allocation5 + $0x20] sm:$0xff] %v51
    %64 = vst [vmem:[#allocation5 + $0x28] sm:$0xff] %v52
    %65 = vst [vmem:[#allocation5 + $0x30] sm:$0xff] %v53
    %66 = vst [vmem:[#allocation5 + $0x38] sm:$0xff] %v54
    %67 = vst [vmem:[#allocation5 + $0x40] sm:$0xff] %v55
    %68 = vst [vmem:[#allocation5 + $0x48] sm:$0xff] %v56
    %69 = vst [vmem:[#allocation5 + $0x50] sm:$0xff] %v57
    %70 = vst [vmem:[#allocation5 + $0x58] sm:$0xff] %v58
    // Predicated region
    $region10: #{tpu_custom_call.1} parent=1 // pred_check
      _
    $region11: #{tpu_custom_call.1} parent=1 // pred_check_branch
      %72 = sbr.rel (0) target = $region13
    $region12: #{tpu_custom_call.1} parent=1 // pred_region
      %s74 = ssub.s32 1536, 1536
      %75 = vsyncadd [#allocation4], %s74
      %s76 = sshll.u32 [#allocation5], 4
      %s77 = int_to_ptr.vmem [resolvable:$true] %s76
      %82 = dma.vmem_to_hbm [thread:$0]  %s77, 1536, %s1, [#allocation4], 128, 128, 8
    $region13: #{tpu_custom_call.1} parent=1 // pred_fallthru
      _
    // Predicated region
    $region14: #{tpu_custom_call.1} parent=1 // pred_check
      _
    $region15: #{tpu_custom_call.1} parent=1 // pred_check_branch
      %84 = sbr.rel (0) target = $region17
    $region16: #{tpu_custom_call.1} parent=1 // pred_region
      %85 = dma.done [#allocation4], 1536
    $region17: #{tpu_custom_call.1} parent=1 // pred_fallthru
      _
    %86 = vsyncpa [#allocation3], 1
    %87 = vsyncpa [#allocation4], 1

</llo_original>
